<compile_context>
chip_gen: v7x
topology: tpu7x:2x2x1
jax: 0.10.0
libtpu: 0.0.40
codegen_flags: <defaults>
</compile_context>

<pallas_src>
import jax
import jax.numpy as jnp
from jax.experimental import pallas as pl
from jax.experimental.pallas import tpu as pltpu

_HIDDEN = 128


def _round_up(x, m):
    return (x + m - 1) // m * m


def _sdfs_kernel(xs_ref, xd_ref, w1s_ref, w1d_ref, b1_ref, w2_ref, b2_ref, o_ref):
    # xs: [TB, S]  xd: [TB, D]  w1s: [S, H]  w1d: [D, H]  b1: [1, H]
    # w2: [H, O]   b2: [1, O]   o: [TB, O]
    # Fused concat: cat(xs, xd) @ W1 == xs @ W1[:S] + xd @ W1[S:]
    h = jnp.dot(xs_ref[...], w1s_ref[...], preferred_element_type=jnp.float32)
    h = h + jnp.dot(xd_ref[...], w1d_ref[...], preferred_element_type=jnp.float32)
    h = h + b1_ref[...]
    h = jnp.maximum(h, 0.0)  # ReLU on the VPU (f32)
    y = jnp.dot(h.astype(w2_ref.dtype), w2_ref[...],
                preferred_element_type=jnp.float32)
    y = y + b2_ref[...]
    o_ref[...] = y.astype(o_ref.dtype)


def prepare_params(params, static_input_size, *, compute_dtype=None):
    """One-time host-side param prep (hoisted out of the per-call path).

    Splits W1 so the concat is fused into two dots inside the kernel, and
    optionally casts the MXU operands to compute_dtype (e.g. bf16).  Biases
    stay f32 so the bias add / ReLU run in f32 on every generation.
    """
    w1, b1, w2, b2 = params
    w1_s = w1[:static_input_size]
    w1_d = w1[static_input_size:]
    if compute_dtype is not None:
        w1_s = w1_s.astype(compute_dtype)
        w1_d = w1_d.astype(compute_dtype)
        w2 = w2.astype(compute_dtype)
    b1 = jnp.asarray(b1, jnp.float32).reshape(1, -1)
    b2 = jnp.asarray(b2, jnp.float32).reshape(1, -1)
    return (w1_s, w1_d, b1, w2, b2)


def _vmem_cap_bytes():
    # Generation-aware cap: v5e/v6e have 128 MiB VMEM, v7x only 64 MiB per TC.
    try:
        return int(pltpu.get_tpu_info().vmem_capacity_bytes) * 3 // 4
    except Exception:
        return 48 << 20  # safe on every generation


def sdfs_forward(static_input, dynamic_features, prepared_params, *, block_b=8192):
    """Fused SDFS forward pass via a single pallas_call.

    prepared_params = prepare_params((w1, b1, w2, b2), S, ...).
    Output dtype follows the input dtype (bf16 in -> bf16 out).
    """
    w1_s, w1_d, b1, w2, b2 = prepared_params
    B, S = static_input.shape
    _, D = dynamic_features.shape
    H = w1_s.shape[1]
    O = w2.shape[1]
    assert w1_s.shape[0] == S and w1_d.shape[0] == D

    xs, xd = static_input, dynamic_features
    if xs.dtype != w1_s.dtype:
        xs = xs.astype(w1_s.dtype)
        xd = xd.astype(w1_s.dtype)
    out_dtype = static_input.dtype

    in_elt = jnp.dtype(xs.dtype).itemsize
    w_elt = jnp.dtype(w2.dtype).itemsize
    out_elt = jnp.dtype(out_dtype).itemsize

    # Sublane multiple for the batch (second-to-last) dim: 8 for f32, 16 for
    # bf16 (packed dtypes stack along sublanes).
    sub = max(8, 8 * (4 // max(in_elt, out_elt)) if min(in_elt, out_elt) < 4 else 8)
    sub = 16 if min(in_elt, out_elt) < 4 else 8

    # Batch tile: big enough to amortize the ~0.35us per-step pipeline
    # overhead, but split into >=2 tiles when possible so v7x megacore
    # sharding keeps both TensorCores busy.
    if B <= sub:
        TB = B  # block dim == full array dim is always legal
    else:
        TB = max(sub, min(block_b, _round_up(pl.cdiv(B, 2), sub)))
    grid = (pl.cdiv(B, TB),)

    # VMEM budget: double-buffered activation/out tiles + resident weights.
    need = (2 * TB * (S + D) * in_elt
            + 2 * TB * O * out_elt
            + 2 * (((S + D) * H + H * O) * w_elt + (H + O) * 4)
            + (2 << 20))
    vmem_limit = min(max(need, 4 << 20), _vmem_cap_bytes())

    return pl.pallas_call(
        _sdfs_kernel,
        out_shape=jax.ShapeDtypeStruct((B, O), out_dtype),
        grid=grid,
        in_specs=[
            pl.BlockSpec((TB, S), lambda i: (i, 0)),    # static tile
            pl.BlockSpec((TB, D), lambda i: (i, 0)),    # dynamic tile
            pl.BlockSpec((S, H), lambda i: (0, 0)),     # W1[:S]  (VMEM-resident)
            pl.BlockSpec((D, H), lambda i: (0, 0)),     # W1[S:]  (VMEM-resident)
            pl.BlockSpec((1, H), lambda i: (0, 0)),     # b1      (VMEM-resident)
            pl.BlockSpec((H, O), lambda i: (0, 0)),     # W2      (VMEM-resident)
            pl.BlockSpec((1, O), lambda i: (0, 0)),     # b2      (VMEM-resident)
        ],
        out_specs=pl.BlockSpec((TB, O), lambda i: (i, 0)),
        compiler_params=pltpu.CompilerParams(
            dimension_semantics=("parallel",),
            vmem_limit_bytes=int(vmem_limit),
        ),
    )(xs, xd, w1_s, w1_d, b1, w2, b2)


def init_params(key, static_input_size, dynamic_input_size, output_size,
                dtype=jnp.float32):
    """Deterministic init mirroring nn.Linear shapes (stored as [in, out])."""
    in_features = static_input_size + dynamic_input_size
    hidden = _HIDDEN
    k1, k2, k3, k4 = jax.random.split(key, 4)
    bound1 = 1.0 / jnp.sqrt(in_features)
    bound2 = 1.0 / jnp.sqrt(hidden)
    w1 = jax.random.uniform(k1, (in_features, hidden), dtype, -bound1, bound1)
    b1 = jax.random.uniform(k2, (1, hidden), dtype, -bound1, bound1)
    w2 = jax.random.uniform(k3, (hidden, output_size), dtype, -bound2, bound2)
    b2 = jax.random.uniform(k4, (1, output_size), dtype, -bound2, bound2)
    return (w1, b1, w2, b2)


def sdfs_reference(static_input, dynamic_features, params):
    """Plain-JAX reference of the PyTorch forward, for a sanity check."""
    w1, b1, w2, b2 = params
    x = jnp.concatenate([static_input, dynamic_features], axis=1)
    h = jnp.maximum(x @ w1 + b1, 0.0)
    return h @ w2 + b2


if __name__ == "__main__":
    # Small shapes consistent with the module: batch=8, static=16, dynamic=16, out=32.
    B, S, D, O = 8, 16, 16, 32
    key = jax.random.PRNGKey(0)
    k_params, k_s, k_d = jax.random.split(key, 3)

    params = init_params(k_params, S, D, O)
    static_input = jax.random.normal(k_s, (B, S), jnp.float32)
    dynamic_features = jax.random.normal(k_d, (B, D), jnp.float32)

    # f32 path: must match the reference tightly.
    prepared = prepare_params(params, S)
    out = jax.block_until_ready(sdfs_forward(static_input, dynamic_features, prepared))
    ref = sdfs_reference(static_input, dynamic_features, params)
    assert out.shape == (B, O)
    assert jnp.allclose(out, ref, atol=1e-5, rtol=1e-5)

    # Multi-tile + ragged-tail path (B not a multiple of the batch tile).
    B2 = 200
    k_s2, k_d2 = jax.random.split(jax.random.PRNGKey(1), 2)
    xs2 = jax.random.normal(k_s2, (B2, S), jnp.float32)
    xd2 = jax.random.normal(k_d2, (B2, D), jnp.float32)
    out2 = jax.block_until_ready(sdfs_forward(xs2, xd2, prepared))
    ref2 = sdfs_reference(xs2, xd2, params)
    assert out2.shape == (B2, O)
    assert jnp.allclose(out2, ref2, atol=1e-5, rtol=1e-5)

    # bf16 end-to-end I/O path (f32 accumulation): looser tolerance.
    prepared_bf16 = prepare_params(params, S, compute_dtype=jnp.bfloat16)
    out_bf16 = jax.block_until_ready(
        sdfs_forward(static_input.astype(jnp.bfloat16),
                     dynamic_features.astype(jnp.bfloat16),
                     prepared_bf16))
    assert out_bf16.shape == (B, O)
    assert jnp.allclose(out_bf16.astype(jnp.float32), ref, atol=1e-1, rtol=1e-1)

    print("KERNEL_OK")
</pallas_src>

<mosaic_0001>
module attributes {stable_mosaic.version = 11 : i64} {
  func.func @_sdfs_kernel(%arg0: i32, %arg1: memref<8x16xf32, #tpu.memory_space<vmem>>, %arg2: memref<8x16xf32, #tpu.memory_space<vmem>>, %arg3: memref<16x128xf32, #tpu.memory_space<vmem>>, %arg4: memref<16x128xf32, #tpu.memory_space<vmem>>, %arg5: memref<1x128xf32, #tpu.memory_space<vmem>>, %arg6: memref<128x32xf32, #tpu.memory_space<vmem>>, %arg7: memref<1x32xf32, #tpu.memory_space<vmem>>, %arg8: memref<8x32xf32, #tpu.memory_space<vmem>>) attributes {dimension_semantics = [#tpu.dimension_semantics<parallel>], iteration_bounds = array<i64: 1>, scalar_prefetch = 0 : i64, scratch_operands = 0 : i64, tpu.core_type = #tpu.core_type<tc>, window_params = [{transform_indices = @transform_0, window_bounds = array<i64: 8, 16>}, {transform_indices = @transform_1, window_bounds = array<i64: 8, 16>}, {pipeline_mode = #tpu.pipeline_mode<synchronous>, transform_indices = @transform_2, window_bounds = array<i64: 16, 128>}, {pipeline_mode = #tpu.pipeline_mode<synchronous>, transform_indices = @transform_3, window_bounds = array<i64: 16, 128>}, {pipeline_mode = #tpu.pipeline_mode<synchronous>, transform_indices = @transform_4, window_bounds = array<i64: 1, 128>}, {pipeline_mode = #tpu.pipeline_mode<synchronous>, transform_indices = @transform_5, window_bounds = array<i64: 128, 32>}, {pipeline_mode = #tpu.pipeline_mode<synchronous>, transform_indices = @transform_6, window_bounds = array<i64: 1, 32>}, {transform_indices = @transform_7, window_bounds = array<i64: 8, 32>}]} {
    %c0 = arith.constant 0 : index
    %c0_0 = arith.constant 0 : index
    %0 = vector.load %arg1[%c0, %c0_0] : memref<8x16xf32, #tpu.memory_space<vmem>>, vector<8x16xf32>
    %c0_1 = arith.constant 0 : index
    %c0_2 = arith.constant 0 : index
    %1 = vector.load %arg3[%c0_1, %c0_2] : memref<16x128xf32, #tpu.memory_space<vmem>>, vector<16x128xf32>
    %cst = arith.constant dense<0.000000e+00> : vector<8x128xf32>
    %2 = tpu.matmul %0, %1, %cst {dimension_numbers = #tpu.dot_dimension_numbers<[1], [0], [0], [1], [0, 0, 1, 1], [], []>} : vector<8x16xf32>, vector<16x128xf32>, vector<8x128xf32> -> vector<8x128xf32>
    %c0_3 = arith.constant 0 : index
    %c0_4 = arith.constant 0 : index
    %3 = vector.load %arg2[%c0_3, %c0_4] : memref<8x16xf32, #tpu.memory_space<vmem>>, vector<8x16xf32>
    %c0_5 = arith.constant 0 : index
    %c0_6 = arith.constant 0 : index
    %4 = vector.load %arg4[%c0_5, %c0_6] : memref<16x128xf32, #tpu.memory_space<vmem>>, vector<16x128xf32>
    %cst_7 = arith.constant dense<0.000000e+00> : vector<8x128xf32>
    %5 = tpu.matmul %3, %4, %cst_7 {dimension_numbers = #tpu.dot_dimension_numbers<[1], [0], [0], [1], [0, 0, 1, 1], [], []>} : vector<8x16xf32>, vector<16x128xf32>, vector<8x128xf32> -> vector<8x128xf32>
    %6 = arith.addf %2, %5 : vector<8x128xf32>
    %c0_8 = arith.constant 0 : index
    %c0_9 = arith.constant 0 : index
    %7 = vector.load %arg5[%c0_8, %c0_9] : memref<1x128xf32, #tpu.memory_space<vmem>>, vector<1x128xf32>
    %8 = vector.broadcast %7 : vector<1x128xf32> to vector<8x128xf32>
    %9 = arith.addf %6, %8 : vector<8x128xf32>
    %cst_10 = arith.constant 0.000000e+00 : f32
    %10 = vector.broadcast %cst_10 : f32 to vector<8x128xf32>
    %11 = arith.maximumf %9, %10 : vector<8x128xf32>
    %c0_11 = arith.constant 0 : index
    %c0_12 = arith.constant 0 : index
    %12 = vector.load %arg6[%c0_11, %c0_12] : memref<128x32xf32, #tpu.memory_space<vmem>>, vector<128x32xf32>
    %cst_13 = arith.constant dense<0.000000e+00> : vector<8x32xf32>
    %13 = tpu.matmul %11, %12, %cst_13 {dimension_numbers = #tpu.dot_dimension_numbers<[1], [0], [0], [1], [0, 0, 1, 1], [], []>} : vector<8x128xf32>, vector<128x32xf32>, vector<8x32xf32> -> vector<8x32xf32>
    %c0_14 = arith.constant 0 : index
    %c0_15 = arith.constant 0 : index
    %14 = vector.load %arg7[%c0_14, %c0_15] : memref<1x32xf32, #tpu.memory_space<vmem>>, vector<1x32xf32>
    %15 = vector.broadcast %14 : vector<1x32xf32> to vector<8x32xf32>
    %16 = arith.addf %13, %15 : vector<8x32xf32>
    %c0_16 = arith.constant 0 : index
    %c0_17 = arith.constant 0 : index
    %17 = vector.load %arg8[%c0_16, %c0_17] : memref<8x32xf32, #tpu.memory_space<vmem>>, vector<8x32xf32>
    tpu.vector_store %arg8[%c0_16, %c0_17], %16 {strides = array<i32>} : memref<8x32xf32, #tpu.memory_space<vmem>>, vector<8x32xf32>,
    return
  }
  func.func @transform_0(%arg0: i32) -> (i32, i32) {
    %c0_i32 = arith.constant 0 : i32
    %c0_i32_0 = arith.constant 0 : i32
    return %arg0, %c0_i32 : i32, i32
  }
  func.func @transform_1(%arg0: i32) -> (i32, i32) {
    %c0_i32 = arith.constant 0 : i32
    %c0_i32_0 = arith.constant 0 : i32
    return %arg0, %c0_i32 : i32, i32
  }
  func.func @transform_2(%arg0: i32) -> (i32, i32) {
    %c0_i32 = arith.constant 0 : i32
    %c0_i32_0 = arith.constant 0 : i32
    %c0_i32_1 = arith.constant 0 : i32
    return %c0_i32, %c0_i32_0 : i32, i32
  }
  func.func @transform_3(%arg0: i32) -> (i32, i32) {
    %c0_i32 = arith.constant 0 : i32
    %c0_i32_0 = arith.constant 0 : i32
    %c0_i32_1 = arith.constant 0 : i32
    return %c0_i32, %c0_i32_0 : i32, i32
  }
  func.func @transform_4(%arg0: i32) -> (i32, i32) {
    %c0_i32 = arith.constant 0 : i32
    %c0_i32_0 = arith.constant 0 : i32
    %c0_i32_1 = arith.constant 0 : i32
    return %c0_i32, %c0_i32_0 : i32, i32
  }
  func.func @transform_5(%arg0: i32) -> (i32, i32) {
    %c0_i32 = arith.constant 0 : i32
    %c0_i32_0 = arith.constant 0 : i32
    %c0_i32_1 = arith.constant 0 : i32
    return %c0_i32, %c0_i32_0 : i32, i32
  }
  func.func @transform_6(%arg0: i32) -> (i32, i32) {
    %c0_i32 = arith.constant 0 : i32
    %c0_i32_0 = arith.constant 0 : i32
    %c0_i32_1 = arith.constant 0 : i32
    return %c0_i32, %c0_i32_0 : i32, i32
  }
  func.func @transform_7(%arg0: i32) -> (i32, i32) {
    %c0_i32 = arith.constant 0 : i32
    %c0_i32_0 = arith.constant 0 : i32
    return %arg0, %c0_i32 : i32, i32
  }
}

</mosaic_0001>

<llo_original>
// kernel: tpu_custom_call.1
$region0: #{tpu_custom_call.1}
  #allocation0 [shape = 'u32[]', space=smem, size = 0x4, offset = 0x4, fixed_abs, tag = 'smem constant byte address 0x4 - core index']
  #allocation1 [shape = 'u32[144,128]{1,0:T(1,128)}', space=vmem, size = 0x12000, scoped, tag = 'internal scratch']
  %s0 = inlined_call_operand.vmem [shape: f32[8,16], index: 0, kind: input, shape index: {}]
  %s1 = inlined_call_operand.vmem [shape: f32[8,16], index: 1, kind: input, shape index: {}]
  %s2 = inlined_call_operand.vmem [shape: f32[16,128], index: 2, kind: input, shape index: {}]
  %s3 = inlined_call_operand.vmem [shape: f32[16,128], index: 3, kind: input, shape index: {}]
  %s4 = inlined_call_operand.vmem [shape: f32[1,128], index: 4, kind: input, shape index: {}]
  %s5 = inlined_call_operand.vmem [shape: f32[128,32], index: 5, kind: input, shape index: {}]
  %s6 = inlined_call_operand.vmem [shape: f32[1,32], index: 6, kind: input, shape index: {}]
  %s7 = inlined_call_operand.hbm [shape: f32[8,32], index: 7, kind: output, shape index: {}]
  %s8 = sld [smem:[#allocation0]]
  $region38: #{tpu_custom_call.1} parent=0
    _
  %s10 = ssub.s32 1, %s8
  %s11 = scalar_select 0, %s10, %s8
  $region1: #{tpu_custom_call.1} parent=0
    #allocation2 [shape = 'u8[4096]{0}', space=vmem, size = 0x1000, scoped, tag = 'output window, operand 0, single buffered']
    #allocation3 [shape = 's32[1]{0}', space=sflag, size = 0x4, scoped, tag = 'scoped memory for tpu_custom_call.1']
    %12 = vsyncpa [#allocation3], 0
    // Predicated region
    $region2: #{tpu_custom_call.1} parent=1 // pred_check
      _
    $region3: #{tpu_custom_call.1} parent=1 // pred_check_branch
      %14 = sbr.rel (0) target = $region5
    $region4: #{tpu_custom_call.1} parent=1 // pred_region
      _
    $region5: #{tpu_custom_call.1} parent=1 // pred_fallthru
      _
    // Predicated region
    $region6: #{tpu_custom_call.1} parent=1 // pred_check
      _
    $region7: #{tpu_custom_call.1} parent=1 // pred_check_branch
      %16 = sbr.rel (0) target = $region9
    $region8: #{tpu_custom_call.1} parent=1 // pred_region
      _
    $region9: #{tpu_custom_call.1} parent=1 // pred_fallthru
      _
    // Predicated region
    $region10: #{tpu_custom_call.1} parent=1 // pred_check
      _
    $region11: #{tpu_custom_call.1} parent=1 // pred_check_branch
      %18 = sbr.rel (0) target = $region13
    $region12: #{tpu_custom_call.1} parent=1 // pred_region
      _
    $region13: #{tpu_custom_call.1} parent=1 // pred_fallthru
      _
    // Predicated region
    $region14: #{tpu_custom_call.1} parent=1 // pred_check
      _
    $region15: #{tpu_custom_call.1} parent=1 // pred_check_branch
      %20 = sbr.rel (0) target = $region17
    $region16: #{tpu_custom_call.1} parent=1 // pred_region
      _
    $region17: #{tpu_custom_call.1} parent=1 // pred_fallthru
      _
    // Predicated region
    $region18: #{tpu_custom_call.1} parent=1 // pred_check
      _
    $region19: #{tpu_custom_call.1} parent=1 // pred_check_branch
      %22 = sbr.rel (0) target = $region21
    $region20: #{tpu_custom_call.1} parent=1 // pred_region
      _
    $region21: #{tpu_custom_call.1} parent=1 // pred_fallthru
      _
    // Predicated region
    $region22: #{tpu_custom_call.1} parent=1 // pred_check
      _
    $region23: #{tpu_custom_call.1} parent=1 // pred_check_branch
      %24 = sbr.rel (0) target = $region25
    $region24: #{tpu_custom_call.1} parent=1 // pred_region
      _
    $region25: #{tpu_custom_call.1} parent=1 // pred_fallthru
      _
    // Predicated region
    $region26: #{tpu_custom_call.1} parent=1 // pred_check
      _
    $region27: #{tpu_custom_call.1} parent=1 // pred_check_branch
      %26 = sbr.rel (0) target = $region29
    $region28: #{tpu_custom_call.1} parent=1 // pred_region
      _
    $region29: #{tpu_custom_call.1} parent=1 // pred_fallthru
      _
    %v27 = vld [vmem:[%s0] sm:$0xff]
    %v28 = vld [vmem:[%s2] sm:$0xff]
    %v29 = vld [vmem:[%s2 + $0x8] sm:$0xff]
    %v30 = vld [vmem:[%s1] sm:$0xff]
    %v31 = vld [vmem:[%s3] sm:$0xff]
    %v32 = vld [vmem:[%s3 + $0x8] sm:$0xff]
    %vm33 = vcmask 130048
    %v35 = vsel %vm33, %v30, 0
    %37 = vmatprep.subr.mxu0 0.0
    %38 = vmatpush1.msra.mxu0 %v31
    %39 = vmatprep.subr.mxu0 0.0
    %40 = vmatpush1.msra.mxu0 %v32
    %41 = vmatprep.subr.mxu0 0.0
    %42 = vmatpush1.msra.mxu0 0.0
    %43 = vmatprep.subr.mxu0 0.0
    %44 = vmatpush1.msra.mxu0 0.0
    %45 = vmatprep.subr.mxu0 0.0
    %46 = vmatpush1.msra.mxu0 0.0
    %47 = vmatprep.subr.mxu0 0.0
    %48 = vmatpush1.msra.mxu0 0.0
    %49 = vmatprep.subr.mxu0 0.0
    %50 = vmatpush1.msra.mxu0 0.0
    %51 = vmatprep.subr.mxu0 0.0
    %52 = vmatpush1.msra.mxu0 0.0
    %53 = vmatprep.subr.mxu0 0.0
    %54 = vmatpush1.msra.mxu0 0.0
    %55 = vmatprep.subr.mxu0 0.0
    %56 = vmatpush1.msra.mxu0 0.0
    %57 = vmatprep.subr.mxu0 0.0
    %58 = vmatpush1.msra.mxu0 0.0
    %59 = vmatprep.subr.mxu0 0.0
    %60 = vmatpush1.msra.mxu0 0.0
    %61 = vmatprep.subr.mxu0 0.0
    %62 = vmatpush1.msra.mxu0 0.0
    %63 = vmatprep.subr.mxu0 0.0
    %64 = vmatpush1.msra.mxu0 0.0
    %65 = vmatprep.subr.mxu0 0.0
    %66 = vmatpush1.msra.mxu0 0.0
    %67 = vmatprep.subr.mxu0 0.0
    %68 = vmatpush1.msra.mxu0 0.0
    %69 = vmatprep.subr.mxu0 0.0
    %70 = vmatpush1.msra.mxu0 0.0
    %71 = vmatprep.subr.mxu0 0.0
    %72 = vmatpush1.msra.mxu0 0.0
    %73 = vmatprep.subr.mxu0 0.0
    %74 = vmatpush1.msra.mxu0 0.0
    %75 = vmatprep.subr.mxu0 0.0
    %76 = vmatpush1.msra.mxu0 0.0
    %77 = vmatprep.subr.mxu0 0.0
    %78 = vmatpush1.msra.mxu0 0.0
    %79 = vmatprep.subr.mxu0 0.0
    %80 = vmatpush1.msra.mxu0 0.0
    %81 = vmatprep.subr.mxu0 0.0
    %82 = vmatpush1.msra.mxu0 0.0
    %83 = vmatprep.subr.mxu0 0.0
    %84 = vmatpush1.msra.mxu0 0.0
    %85 = vmatprep.subr.mxu0 0.0
    %86 = vmatpush1.msra.mxu0 0.0
    %87 = vmatprep.subr.mxu0 0.0
    %88 = vmatpush1.msra.mxu0 0.0
    %89 = vmatprep.subr.mxu0 0.0
    %90 = vmatpush1.msra.mxu0 0.0
    %91 = vmatprep.subr.mxu0 0.0
    %92 = vmatpush1.msra.mxu0 0.0
    %93 = vmatprep.subr.mxu0 0.0
    %94 = vmatpush1.msra.mxu0 0.0
    %95 = vmatprep.subr.mxu0 0.0
    %96 = vmatpush1.msra.mxu0 0.0
    %97 = vmatprep.subr.mxu0 0.0
    %98 = vmatpush1.msra.mxu0 0.0
    %99 = vmatprep.subr.mxu0 0.0
    %100 = vmatpush1.msra.mxu0 0.0
    %101 = vmatprep.mubr.f32.mxu0 0.0
    %102 = vmatmul.mubr.f32.gmra.mrb[0].mxu0 %v35
    %v103 = vpop.f32.mrb[0].mxu0
    %v104 = vadd.f32 0.0, %v103
    %v105 = vpop.f32.mrb[0].mxu0
    %106 = vdwg.mxu0
    %v108 = vsel %vm33, %v27, 0
    %110 = vmatprep.subr.mxu0 0.0
    %111 = vmatpush1.msra.mxu0 %v28
    %112 = vmatprep.subr.mxu0 0.0
    %113 = vmatpush1.msra.mxu0 %v29
    %114 = vmatprep.subr.mxu0 0.0
    %115 = vmatpush1.msra.mxu0 0.0
    %116 = vmatprep.subr.mxu0 0.0
    %117 = vmatpush1.msra.mxu0 0.0
    %118 = vmatprep.subr.mxu0 0.0
    %119 = vmatpush1.msra.mxu0 0.0
    %120 = vmatprep.subr.mxu0 0.0
    %121 = vmatpush1.msra.mxu0 0.0
    %122 = vmatprep.subr.mxu0 0.0
    %123 = vmatpush1.msra.mxu0 0.0
    %124 = vmatprep.subr.mxu0 0.0
    %125 = vmatpush1.msra.mxu0 0.0
    %126 = vmatprep.subr.mxu0 0.0
    %127 = vmatpush1.msra.mxu0 0.0
    %128 = vmatprep.subr.mxu0 0.0
    %129 = vmatpush1.msra.mxu0 0.0
    %130 = vmatprep.subr.mxu0 0.0
    %131 = vmatpush1.msra.mxu0 0.0
    %132 = vmatprep.subr.mxu0 0.0
    %133 = vmatpush1.msra.mxu0 0.0
    %134 = vmatprep.subr.mxu0 0.0
    %135 = vmatpush1.msra.mxu0 0.0
    %136 = vmatprep.subr.mxu0 0.0
    %137 = vmatpush1.msra.mxu0 0.0
    %138 = vmatprep.subr.mxu0 0.0
    %139 = vmatpush1.msra.mxu0 0.0
    %140 = vmatprep.subr.mxu0 0.0
    %141 = vmatpush1.msra.mxu0 0.0
    %142 = vmatprep.subr.mxu0 0.0
    %143 = vmatpush1.msra.mxu0 0.0
    %144 = vmatprep.subr.mxu0 0.0
    %145 = vmatpush1.msra.mxu0 0.0
    %146 = vmatprep.subr.mxu0 0.0
    %147 = vmatpush1.msra.mxu0 0.0
    %148 = vmatprep.subr.mxu0 0.0
    %149 = vmatpush1.msra.mxu0 0.0
    %150 = vmatprep.subr.mxu0 0.0
    %151 = vmatpush1.msra.mxu0 0.0
    %152 = vmatprep.subr.mxu0 0.0
    %153 = vmatpush1.msra.mxu0 0.0
    %154 = vmatprep.subr.mxu0 0.0
    %155 = vmatpush1.msra.mxu0 0.0
    %156 = vmatprep.subr.mxu0 0.0
    %157 = vmatpush1.msra.mxu0 0.0
    %158 = vmatprep.subr.mxu0 0.0
    %159 = vmatpush1.msra.mxu0 0.0
    %160 = vmatprep.subr.mxu0 0.0
    %161 = vmatpush1.msra.mxu0 0.0
    %162 = vmatprep.subr.mxu0 0.0
    %163 = vmatpush1.msra.mxu0 0.0
    %164 = vmatprep.subr.mxu0 0.0
    %165 = vmatpush1.msra.mxu0 0.0
    %166 = vmatprep.subr.mxu0 0.0
    %167 = vmatpush1.msra.mxu0 0.0
    %168 = vmatprep.subr.mxu0 0.0
    %169 = vmatpush1.msra.mxu0 0.0
    %170 = vmatprep.subr.mxu0 0.0
    %171 = vmatpush1.msra.mxu0 0.0
    %172 = vmatprep.subr.mxu0 0.0
    %173 = vmatpush1.msra.mxu0 0.0
    %174 = vmatprep.mubr.f32.mxu0 0.0
    %175 = vmatmul.mubr.f32.gmra.mrb[0].mxu0 %v108
    %v176 = vpop.f32.mrb[0].mxu0
    %v177 = vadd.f32 %v104, %v176
    %v178 = vpop.f32.mrb[0].mxu0
    %179 = vdwg.mxu0
    %v180 = vld [vmem:[%s4] sm:$0x1]
    %v182 = vlaneseq
    %v183 = vshrl.u32 %v182, 7
    %v184 = vsub.s32 0, %v183
    %v185 = vrot.slane %v180, %v184
    %v187 = vadd.f32 %v177, %v185
    %v188 = vmax.f32 %v187, 0.0
    %v189 = vld [vmem:[%s5] sm:$0xff]
    %v190 = vld [vmem:[%s5 + $0x8] sm:$0xff]
    %v191 = vld [vmem:[%s5 + $0x10] sm:$0xff]
    %v192 = vld [vmem:[%s5 + $0x18] sm:$0xff]
    %v193 = vld [vmem:[%s5 + $0x20] sm:$0xff]
    %v194 = vld [vmem:[%s5 + $0x28] sm:$0xff]
    %v195 = vld [vmem:[%s5 + $0x30] sm:$0xff]
    %v196 = vld [vmem:[%s5 + $0x38] sm:$0xff]
    %v197 = vld [vmem:[%s5 + $0x40] sm:$0xff]
    %v198 = vld [vmem:[%s5 + $0x48] sm:$0xff]
    %v199 = vld [vmem:[%s5 + $0x50] sm:$0xff]
    %v200 = vld [vmem:[%s5 + $0x58] sm:$0xff]
    %v201 = vld [vmem:[%s5 + $0x60] sm:$0xff]
    %v202 = vld [vmem:[%s5 + $0x68] sm:$0xff]
    %v203 = vld [vmem:[%s5 + $0x70] sm:$0xff]
    %v204 = vld [vmem:[%s5 + $0x78] sm:$0xff]
    %v205 = vld [vmem:[%s6] sm:$0x1]
    %v207 = vlaneseq
    %v208 = vshrl.u32 %v207, 7
    %v209 = vsub.s32 0, %v208
    %v210 = vrot.slane %v205, %v209
    %212 = vmatprep.subr.mxu0 0.0
    %213 = vmatpush1.msra.mxu0 %v189
    %214 = vmatprep.subr.mxu0 0.0
    %215 = vmatpush1.msra.mxu0 %v190
    %216 = vmatprep.subr.mxu0 0.0
    %217 = vmatpush1.msra.mxu0 %v191
    %218 = vmatprep.subr.mxu0 0.0
    %219 = vmatpush1.msra.mxu0 %v192
    %220 = vmatprep.subr.mxu0 0.0
    %221 = vmatpush1.msra.mxu0 %v193
    %222 = vmatprep.subr.mxu0 0.0
    %223 = vmatpush1.msra.mxu0 %v194
    %224 = vmatprep.subr.mxu0 0.0
    %225 = vmatpush1.msra.mxu0 %v195
    %226 = vmatprep.subr.mxu0 0.0
    %227 = vmatpush1.msra.mxu0 %v196
    %228 = vmatprep.subr.mxu0 0.0
    %229 = vmatpush1.msra.mxu0 %v197
    %230 = vmatprep.subr.mxu0 0.0
    %231 = vmatpush1.msra.mxu0 %v198
    %232 = vmatprep.subr.mxu0 0.0
    %233 = vmatpush1.msra.mxu0 %v199
    %234 = vmatprep.subr.mxu0 0.0
    %235 = vmatpush1.msra.mxu0 %v200
    %236 = vmatprep.subr.mxu0 0.0
    %237 = vmatpush1.msra.mxu0 %v201
    %238 = vmatprep.subr.mxu0 0.0
    %239 = vmatpush1.msra.mxu0 %v202
    %240 = vmatprep.subr.mxu0 0.0
    %241 = vmatpush1.msra.mxu0 %v203
    %242 = vmatprep.subr.mxu0 0.0
    %243 = vmatpush1.msra.mxu0 %v204
    %244 = vmatprep.subr.mxu0 0.0
    %245 = vmatpush1.msra.mxu0 0.0
    %246 = vmatprep.subr.mxu0 0.0
    %247 = vmatpush1.msra.mxu0 0.0
    %248 = vmatprep.subr.mxu0 0.0
    %249 = vmatpush1.msra.mxu0 0.0
    %250 = vmatprep.subr.mxu0 0.0
    %251 = vmatpush1.msra.mxu0 0.0
    %252 = vmatprep.subr.mxu0 0.0
    %253 = vmatpush1.msra.mxu0 0.0
    %254 = vmatprep.subr.mxu0 0.0
    %255 = vmatpush1.msra.mxu0 0.0
    %256 = vmatprep.subr.mxu0 0.0
    %257 = vmatpush1.msra.mxu0 0.0
    %258 = vmatprep.subr.mxu0 0.0
    %259 = vmatpush1.msra.mxu0 0.0
    %260 = vmatprep.subr.mxu0 0.0
    %261 = vmatpush1.msra.mxu0 0.0
    %262 = vmatprep.subr.mxu0 0.0
    %263 = vmatpush1.msra.mxu0 0.0
    %264 = vmatprep.subr.mxu0 0.0
    %265 = vmatpush1.msra.mxu0 0.0
    %266 = vmatprep.subr.mxu0 0.0
    %267 = vmatpush1.msra.mxu0 0.0
    %268 = vmatprep.subr.mxu0 0.0
    %269 = vmatpush1.msra.mxu0 0.0
    %270 = vmatprep.subr.mxu0 0.0
    %271 = vmatpush1.msra.mxu0 0.0
    %272 = vmatprep.subr.mxu0 0.0
    %273 = vmatpush1.msra.mxu0 0.0
    %274 = vmatprep.subr.mxu0 0.0
    %275 = vmatpush1.msra.mxu0 0.0
    %276 = vmatprep.mubr.f32.mxu0 0.0
    %277 = vmatmul.mubr.f32.gmra.mrb[0].mxu0 %v188
    %v278 = vpop.f32.mrb[0].mxu0
    %v279 = vadd.f32 %v210, %v278
    %v280 = vpop.f32.mrb[0].mxu0
    %281 = vdwg.mxu0
    %vm282 = vcmask 261120
    %283 = vst.msk [vmem:[#allocation2] sm:$0xff] %vm282, %v279
    // Predicated region
    $region30: #{tpu_custom_call.1} parent=1 // pred_check
      _
    $region31: #{tpu_custom_call.1} parent=1 // pred_check_branch
      %285 = sbr.rel (0) target = $region33
    $region32: #{tpu_custom_call.1} parent=1 // pred_region
      %s287 = ssub.s32 128, 128
      %288 = vsyncadd [#allocation3], %s287
      %s290 = sshll.u32 [#allocation2], 4
      %s291 = int_to_ptr.vmem [resolvable:$true] %s290
      %293 = dma.vmem_to_hbm [thread:$0]  %s291, 128, %s7, [#allocation3]
    $region33: #{tpu_custom_call.1} parent=1 // pred_fallthru
      _
    // Predicated region
    $region34: #{tpu_custom_call.1} parent=1 // pred_check
      _
    $region35: #{tpu_custom_call.1} parent=1 // pred_check_branch
      %295 = sbr.rel (0) target = $region37
    $region36: #{tpu_custom_call.1} parent=1 // pred_region
      %296 = dma.done [#allocation3], 128
    $region37: #{tpu_custom_call.1} parent=1 // pred_fallthru
      _
    %297 = vsyncpa [#allocation3], 1

</llo_original>
